<compile_context>
chip_gen: v6e
topology: v6e:2x2x1
jax: 0.10.0
libtpu: 0.0.40
codegen_flags: <defaults>
</compile_context>

<pallas_src>
import numpy as np

import jax
import jax.numpy as jnp
from jax.experimental import pallas as pl
from jax.experimental.pallas import tpu as pltpu

_BN_EPS = 1e-5


# ---------------------------------------------------------------------------
# Fused kernel: h = x ; for each layer: h = relu(h @ M_l + b_l) ; out = h
# All refs are full-extent VMEM blocks (no grid / tiling needed at these
# shapes).  refs = (M_0, b_0, M_1, b_1, ..., M_{n-1}, b_{n-1}, o_ref).
# ---------------------------------------------------------------------------
def _fused_conv_encoder_kernel(x_ref, *refs):
    o_ref = refs[-1]
    layer_refs = refs[:-1]
    n_layers = len(layer_refs) // 2

    h = x_ref[...].astype(jnp.float32)
    for i in range(n_layers):  # static Python loop -> fully unrolled at trace time
        m_ref = layer_refs[2 * i]
        b_ref = layer_refs[2 * i + 1]
        h = jnp.dot(h, m_ref[...], preferred_element_type=jnp.float32)
        h = jnp.maximum(h + b_ref[...], 0.0)  # bias (1, N) broadcasts over rows
    o_ref[...] = h.astype(o_ref.dtype)


def conv_encoder_forward(x, fused_params):
    """x: (batch, seq_len) float32 -> (batch, C_last * L_last) float32."""
    flat = [x]
    for m, b in fused_params:
        flat += [m, b]
    n_out = fused_params[-1][0].shape[1]
    batch = x.shape[0]

    # VMEM budget guard (trace-time, static shapes): everything is resident.
    est_bytes = sum(int(np.prod(a.shape)) * 4 for a in flat) + batch * n_out * 4
    assert est_bytes < 16 * 1024 * 1024, (
        "fused ConvEncoder kernel keeps all weights + activations in VMEM; "
        "add tiling / a grid before reusing at larger shapes"
    )

    return pl.pallas_call(
        _fused_conv_encoder_kernel,
        out_shape=jax.ShapeDtypeStruct((batch, n_out), jnp.float32),
        in_specs=[pl.BlockSpec(memory_space=pltpu.MemorySpace.VMEM)] * len(flat),
        out_specs=pl.BlockSpec(memory_space=pltpu.MemorySpace.VMEM),
        compiler_params=pltpu.CompilerParams(
            vmem_limit_bytes=16 * 1024 * 1024,
        ),
    )(*flat)


conv_encoder_forward_jit = jax.jit(conv_encoder_forward)


# ---------------------------------------------------------------------------
# Init-time parameter construction (PyTorch-style) and fusion.
# ---------------------------------------------------------------------------
def init_conv_encoder_params(key, channels):
    """Conv1d(k=3) weights U(-1/sqrt(fan_in), ...) + randomized eval-mode BN stats."""
    conv_params, bn_params = [], []
    for i in range(len(channels) - 1):
        c_in, c_out = channels[i], channels[i + 1]
        key, wk, bk, gk, bek, mk, vk = jax.random.split(key, 7)
        bound = 1.0 / np.sqrt(c_in * 3)
        w = jax.random.uniform(wk, (c_out, c_in, 3), jnp.float32, -bound, bound)
        b = jax.random.uniform(bk, (c_out,), jnp.float32, -bound, bound)
        gamma = jax.random.uniform(gk, (c_out,), jnp.float32, 0.5, 1.5)
        beta = jax.random.uniform(bek, (c_out,), jnp.float32, -0.1, 0.1)
        mean = jax.random.uniform(mk, (c_out,), jnp.float32, -0.1, 0.1)
        var = jax.random.uniform(vk, (c_out,), jnp.float32, 0.5, 1.5)
        conv_params.append((w, b))
        bn_params.append((gamma, beta, mean, var))
    return conv_params, bn_params


def _conv1d_to_dense(w_eff, l_in, l_out, channels_major_out):
    """Lower Conv1d(k=3, stride=2, pad=1) to a dense (L_in*C_in, L_out*C_out) matrix.

    Row index    = l * C_in + ci   (position-major, channels-last per position)
    Column index = t * C_out + co  (same layout, chains into the next layer), or
                   co * L_out + t  for the last layer (matches torch .view(B,-1)).
    """
    c_out, c_in, k = w_eff.shape
    mat = np.zeros((l_in * c_in, l_out * c_out), dtype=np.float32)
    for t in range(l_out):
        for kk in range(k):
            l = 2 * t + kk - 1  # stride=2, padding=1
            if 0 <= l < l_in:
                blk = w_eff[:, :, kk].T  # (c_in, c_out)
                if channels_major_out:
                    mat[l * c_in:(l + 1) * c_in, t::l_out] = blk
                else:
                    mat[l * c_in:(l + 1) * c_in, t * c_out:(t + 1) * c_out] = blk
    return mat


def build_fused_params(conv_params, bn_params, seq_len, eps=_BN_EPS):
    """Fold eval-mode BatchNorm into each conv, lower each conv to one matmul."""
    fused = []
    l_in = seq_len
    n = len(conv_params)
    for i, ((w, b), (gamma, beta, mean, var)) in enumerate(zip(conv_params, bn_params)):
        w_np, b_np = np.asarray(w), np.asarray(b)
        g_np, be_np = np.asarray(gamma), np.asarray(beta)
        m_np, v_np = np.asarray(mean), np.asarray(var)

        scale = g_np / np.sqrt(v_np + eps)                 # per-output-channel
        w_eff = w_np * scale[:, None, None]
        b_eff = (b_np - m_np) * scale + be_np

        l_out = (l_in - 1) // 2 + 1                        # k=3, s=2, p=1
        channels_major = (i == n - 1)                      # last layer: torch flatten order
        mat = _conv1d_to_dense(w_eff, l_in, l_out, channels_major)
        if channels_major:
            bias_vec = np.repeat(b_eff, l_out)             # index co*L_out + t
        else:
            bias_vec = np.tile(b_eff, l_out)               # index t*C_out + co

        fused.append((jnp.asarray(mat),
                      jnp.asarray(bias_vec.reshape(1, -1).astype(np.float32))))
        l_in = l_out
    return fused


# ---------------------------------------------------------------------------
# Pure-JAX reference (unfused: lax conv + explicit BatchNorm + ReLU + flatten)
# ---------------------------------------------------------------------------
def reference_forward(x, conv_params, bn_params, eps=_BN_EPS):
    h = x[:, None, :]  # x.unsqueeze(1): (B, 1, L)
    for (w, b), (gamma, beta, mean, var) in zip(conv_params, bn_params):
        h = jax.lax.conv_general_dilated(
            h, w, window_strides=(2,), padding=((1, 1),),
            dimension_numbers=("NCH", "OIH", "NCH"),
            precision=jax.lax.Precision.HIGHEST,
        ) + b[None, :, None]
        inv = 1.0 / jnp.sqrt(var + eps)
        h = (h - mean[None, :, None]) * (inv * gamma)[None, :, None] + beta[None, :, None]
        h = jnp.maximum(h, 0.0)
        # Dropout == identity in eval mode.
    return h.reshape(h.shape[0], -1)  # x.view(B, -1): channel-major flatten


if __name__ == "__main__":
    # Small shapes consistent with the module: forward does x.unsqueeze(1),
    # so channels[0] == 1 and the input is (batch, seq_len).
    # channels has 3 conv blocks (last block index i=2 is even, so the
    # module's `if i % 2 == 0: self.conv_layers = ...` quirk still captures
    # the full stack, matching this implementation).
    batch = 8
    seq_len = 64
    channels = [1, 8, 16, 32]

    key = jax.random.PRNGKey(0)
    key, xk = jax.random.split(key)
    x = jax.random.normal(xk, (batch, seq_len), dtype=jnp.float32)

    conv_params, bn_params = init_conv_encoder_params(key, channels)
    fused_params = build_fused_params(conv_params, bn_params, seq_len)

    out = conv_encoder_forward_jit(x, fused_params)
    out = jax.block_until_ready(out)

    ref = reference_forward(x, conv_params, bn_params)
    final_len = seq_len // (2 ** (len(channels) - 1))          # 64 -> 32 -> 16 -> 8
    assert out.shape == (batch, channels[-1] * final_len)      # (8, 256)
    max_err = float(jnp.max(jnp.abs(out - ref)))
    assert jnp.allclose(out, ref, atol=1e-4, rtol=1e-4), max_err

    print("KERNEL_OK")
</pallas_src>

<mosaic_0001>
module attributes {stable_mosaic.version = 11 : i64} {
  func.func @_fused_conv_encoder_kernel(%arg0: memref<8x64xf32, #tpu.memory_space<vmem>>, %arg1: memref<64x256xf32, #tpu.memory_space<vmem>>, %arg2: memref<1x256xf32, #tpu.memory_space<vmem>>, %arg3: memref<256x256xf32, #tpu.memory_space<vmem>>, %arg4: memref<1x256xf32, #tpu.memory_space<vmem>>, %arg5: memref<256x256xf32, #tpu.memory_space<vmem>>, %arg6: memref<1x256xf32, #tpu.memory_space<vmem>>, %arg7: memref<8x256xf32, #tpu.memory_space<vmem>>) attributes {dimension_semantics = [], scalar_prefetch = 0 : i64, scratch_operands = 0 : i64, tpu.core_type = #tpu.core_type<tc>} {
    %c0 = arith.constant 0 : index
    %c0_0 = arith.constant 0 : index
    %0 = vector.load %arg0[%c0, %c0_0] : memref<8x64xf32, #tpu.memory_space<vmem>>, vector<8x64xf32>
    %c0_1 = arith.constant 0 : index
    %c0_2 = arith.constant 0 : index
    %1 = vector.load %arg1[%c0_1, %c0_2] : memref<64x256xf32, #tpu.memory_space<vmem>>, vector<64x256xf32>
    %cst = arith.constant dense<0.000000e+00> : vector<8x256xf32>
    %2 = tpu.matmul %0, %1, %cst {dimension_numbers = #tpu.dot_dimension_numbers<[1], [0], [0], [1], [0, 0, 1, 1], [], []>} : vector<8x64xf32>, vector<64x256xf32>, vector<8x256xf32> -> vector<8x256xf32>
    %c0_3 = arith.constant 0 : index
    %c0_4 = arith.constant 0 : index
    %3 = vector.load %arg2[%c0_3, %c0_4] : memref<1x256xf32, #tpu.memory_space<vmem>>, vector<1x256xf32>
    %4 = vector.broadcast %3 : vector<1x256xf32> to vector<8x256xf32>
    %5 = arith.addf %2, %4 : vector<8x256xf32>
    %cst_5 = arith.constant 0.000000e+00 : f32
    %6 = vector.broadcast %cst_5 : f32 to vector<8x256xf32>
    %7 = arith.maximumf %5, %6 : vector<8x256xf32>
    %c0_6 = arith.constant 0 : index
    %c0_7 = arith.constant 0 : index
    %8 = vector.load %arg3[%c0_6, %c0_7] : memref<256x256xf32, #tpu.memory_space<vmem>>, vector<256x256xf32>
    %cst_8 = arith.constant dense<0.000000e+00> : vector<8x256xf32>
    %9 = tpu.matmul %7, %8, %cst_8 {dimension_numbers = #tpu.dot_dimension_numbers<[1], [0], [0], [1], [0, 0, 1, 1], [], []>} : vector<8x256xf32>, vector<256x256xf32>, vector<8x256xf32> -> vector<8x256xf32>
    %c0_9 = arith.constant 0 : index
    %c0_10 = arith.constant 0 : index
    %10 = vector.load %arg4[%c0_9, %c0_10] : memref<1x256xf32, #tpu.memory_space<vmem>>, vector<1x256xf32>
    %11 = vector.broadcast %10 : vector<1x256xf32> to vector<8x256xf32>
    %12 = arith.addf %9, %11 : vector<8x256xf32>
    %cst_11 = arith.constant 0.000000e+00 : f32
    %13 = vector.broadcast %cst_11 : f32 to vector<8x256xf32>
    %14 = arith.maximumf %12, %13 : vector<8x256xf32>
    %c0_12 = arith.constant 0 : index
    %c0_13 = arith.constant 0 : index
    %15 = vector.load %arg5[%c0_12, %c0_13] : memref<256x256xf32, #tpu.memory_space<vmem>>, vector<256x256xf32>
    %cst_14 = arith.constant dense<0.000000e+00> : vector<8x256xf32>
    %16 = tpu.matmul %14, %15, %cst_14 {dimension_numbers = #tpu.dot_dimension_numbers<[1], [0], [0], [1], [0, 0, 1, 1], [], []>} : vector<8x256xf32>, vector<256x256xf32>, vector<8x256xf32> -> vector<8x256xf32>
    %c0_15 = arith.constant 0 : index
    %c0_16 = arith.constant 0 : index
    %17 = vector.load %arg6[%c0_15, %c0_16] : memref<1x256xf32, #tpu.memory_space<vmem>>, vector<1x256xf32>
    %18 = vector.broadcast %17 : vector<1x256xf32> to vector<8x256xf32>
    %19 = arith.addf %16, %18 : vector<8x256xf32>
    %cst_17 = arith.constant 0.000000e+00 : f32
    %20 = vector.broadcast %cst_17 : f32 to vector<8x256xf32>
    %21 = arith.maximumf %19, %20 : vector<8x256xf32>
    %c0_18 = arith.constant 0 : index
    %c0_19 = arith.constant 0 : index
    %22 = vector.load %arg7[%c0_18, %c0_19] : memref<8x256xf32, #tpu.memory_space<vmem>>, vector<8x256xf32>
    tpu.vector_store %arg7[%c0_18, %c0_19], %21 {strides = array<i32>} : memref<8x256xf32, #tpu.memory_space<vmem>>, vector<8x256xf32>,
    return
  }
}

</mosaic_0001>

<llo_original>
// kernel: conv_encoder_forward.1
$region0: #{conv_encoder_forward.1}
  #allocation0 [shape = 'u32[]', space=smem, size = 0x4, offset = 0x4, fixed_abs, tag = 'smem constant byte address 0x4 - core index']
  #allocation1 [shape = 'u32[144,128]{1,0:T(1,128)}', space=vmem, size = 0x12000, scoped, tag = 'internal scratch']
  %s0 = inlined_call_operand.hbm [shape: f32[8,64], index: 0, kind: input, shape index: {}]
  %s1 = inlined_call_operand.hbm [shape: f32[64,256], index: 1, kind: input, shape index: {}]
  %s2 = inlined_call_operand.vmem [shape: f32[1,256], index: 2, kind: input, shape index: {}]
  %s3 = inlined_call_operand.hbm [shape: f32[256,256], index: 3, kind: input, shape index: {}]
  %s4 = inlined_call_operand.vmem [shape: f32[1,256], index: 4, kind: input, shape index: {}]
  %s5 = inlined_call_operand.hbm [shape: f32[256,256], index: 5, kind: input, shape index: {}]
  %s6 = inlined_call_operand.vmem [shape: f32[1,256], index: 6, kind: input, shape index: {}]
  %s7 = inlined_call_operand.hbm [shape: f32[8,256], index: 7, kind: output, shape index: {}]
  %s8 = sld [smem:[#allocation0]]
  $region54: #{conv_encoder_forward.1} parent=0
    _
  %s10 = ssub.s32 1, %s8
  %s11 = scalar_select 0, %s10, %s8
  $region1: #{conv_encoder_forward.1} parent=0
    #allocation2 [shape = 'u8[4096]{0}', space=vmem, size = 0x1000, scoped, tag = 'input window, operand 0, single buffered']
    #allocation3 [shape = 's32[1]{0}', space=sflag, size = 0x4, scoped, tag = 'scoped memory for conv_encoder_forward.1']
    #allocation4 [shape = 's32[1]{0}', space=sflag, size = 0x4, scoped, tag = 'scoped memory for conv_encoder_forward.1']
    #allocation5 [shape = 'u8[65536]{0}', space=vmem, size = 0x10000, scoped, tag = 'input window, operand 1, single buffered']
    #allocation6 [shape = 's32[1]{0}', space=sflag, size = 0x4, scoped, tag = 'scoped memory for conv_encoder_forward.1']
    #allocation7 [shape = 'u8[262144]{0}', space=vmem, size = 0x40000, scoped, tag = 'input window, operand 3, single buffered']
    #allocation8 [shape = 'u8[262144]{0}', space=vmem, size = 0x40000, scoped, tag = 'input window, operand 5, single buffered']
    #allocation9 [shape = 's32[1]{0}', space=sflag, size = 0x4, scoped, tag = 'scoped memory for conv_encoder_forward.1']
    #allocation10 [shape = 'u8[8192]{0}', space=vmem, size = 0x2000, scoped, tag = 'output window, operand 0, single buffered']
    %12 = vsyncpa [#allocation3], 0
    %13 = vsyncpa [#allocation6], 0
    %14 = vsyncpa [#allocation9], 0
    %15 = vsyncpa [#allocation4], 0
    // Predicated region
    $region2: #{conv_encoder_forward.1} parent=1 // pred_check
      _
    $region3: #{conv_encoder_forward.1} parent=1 // pred_check_branch
      %17 = sbr.rel (0) target = $region5
    $region4: #{conv_encoder_forward.1} parent=1 // pred_region
      %s19 = ssub.s32 128, 128
      %20 = vsyncadd [#allocation3], %s19
      %s22 = sshll.u32 [#allocation2], 4
      %s23 = int_to_ptr.vmem [resolvable:$true] %s22
      %25 = dma.hbm_to_vmem [thread:$0]  %s0, 128, %s23, [#allocation3]
    $region5: #{conv_encoder_forward.1} parent=1 // pred_fallthru
      _
    // Predicated region
    $region6: #{conv_encoder_forward.1} parent=1 // pred_check
      _
    $region7: #{conv_encoder_forward.1} parent=1 // pred_check_branch
      %27 = sbr.rel (0) target = $region9
    $region8: #{conv_encoder_forward.1} parent=1 // pred_region
      %s29 = ssub.s32 2048, 2048
      %30 = vsyncadd [#allocation6], %s29
      %s31 = sshll.u32 [#allocation5], 4
      %s32 = int_to_ptr.vmem [resolvable:$true] %s31
      %37 = dma.hbm_to_vmem [thread:$0]  %s1, 2048, %s32, [#allocation6], 256, 256, 16
    $region9: #{conv_encoder_forward.1} parent=1 // pred_fallthru
      _
    // Predicated region
    $region10: #{conv_encoder_forward.1} parent=1 // pred_check
      _
    $region11: #{conv_encoder_forward.1} parent=1 // pred_check_branch
      %39 = sbr.rel (0) target = $region13
    $region12: #{conv_encoder_forward.1} parent=1 // pred_region
      _
    $region13: #{conv_encoder_forward.1} parent=1 // pred_fallthru
      _
    // Predicated region
    $region14: #{conv_encoder_forward.1} parent=1 // pred_check
      _
    $region15: #{conv_encoder_forward.1} parent=1 // pred_check_branch
      %41 = sbr.rel (0) target = $region17
    $region16: #{conv_encoder_forward.1} parent=1 // pred_region
      %s43 = ssub.s32 8192, 8192
      %44 = vsyncadd [#allocation6], %s43
      %s45 = sshll.u32 [#allocation7], 4
      %s46 = int_to_ptr.vmem [resolvable:$true] %s45
      %51 = dma.hbm_to_vmem [thread:$0]  %s3, 8192, %s46, [#allocation6], 256, 256, 16
    $region17: #{conv_encoder_forward.1} parent=1 // pred_fallthru
      _
    // Predicated region
    $region18: #{conv_encoder_forward.1} parent=1 // pred_check
      _
    $region19: #{conv_encoder_forward.1} parent=1 // pred_check_branch
      %53 = sbr.rel (0) target = $region21
    $region20: #{conv_encoder_forward.1} parent=1 // pred_region
      _
    $region21: #{conv_encoder_forward.1} parent=1 // pred_fallthru
      _
    // Predicated region
    $region22: #{conv_encoder_forward.1} parent=1 // pred_check
      _
    $region23: #{conv_encoder_forward.1} parent=1 // pred_check_branch
      %55 = sbr.rel (0) target = $region25
    $region24: #{conv_encoder_forward.1} parent=1 // pred_region
      %s57 = ssub.s32 8192, 8192
      %58 = vsyncadd [#allocation9], %s57
      %s59 = sshll.u32 [#allocation8], 4
      %s60 = int_to_ptr.vmem [resolvable:$true] %s59
      %65 = dma.hbm_to_vmem [thread:$0]  %s5, 8192, %s60, [#allocation9], 256, 256, 16
    $region25: #{conv_encoder_forward.1} parent=1 // pred_fallthru
      _
    // Predicated region
    $region26: #{conv_encoder_forward.1} parent=1 // pred_check
      _
    $region27: #{conv_encoder_forward.1} parent=1 // pred_check_branch
      %67 = sbr.rel (0) target = $region29
    $region28: #{conv_encoder_forward.1} parent=1 // pred_region
      _
    $region29: #{conv_encoder_forward.1} parent=1 // pred_fallthru
      _
    // Predicated region
    $region30: #{conv_encoder_forward.1} parent=1 // pred_check
      _
    $region31: #{conv_encoder_forward.1} parent=1 // pred_check_branch
      %69 = sbr.rel (0) target = $region33
    $region32: #{conv_encoder_forward.1} parent=1 // pred_region
      %70 = dma.done [#allocation3], 128
    $region33: #{conv_encoder_forward.1} parent=1 // pred_fallthru
      _
    // Predicated region
    $region34: #{conv_encoder_forward.1} parent=1 // pred_check
      _
    $region35: #{conv_encoder_forward.1} parent=1 // pred_check_branch
      %72 = sbr.rel (0) target = $region37
    $region36: #{conv_encoder_forward.1} parent=1 // pred_region
      %73 = dma.done [#allocation6], 2048
    $region37: #{conv_encoder_forward.1} parent=1 // pred_fallthru
      _
    // Predicated region
    $region38: #{conv_encoder_forward.1} parent=1 // pred_check
      _
    $region39: #{conv_encoder_forward.1} parent=1 // pred_check_branch
      %75 = sbr.rel (0) target = $region41
    $region40: #{conv_encoder_forward.1} parent=1 // pred_region
      %76 = dma.done [#allocation6], 8192
    $region41: #{conv_encoder_forward.1} parent=1 // pred_fallthru
      _
    // Predicated region
    $region42: #{conv_encoder_forward.1} parent=1 // pred_check
      _
    $region43: #{conv_encoder_forward.1} parent=1 // pred_check_branch
      %78 = sbr.rel (0) target = $region45
    $region44: #{conv_encoder_forward.1} parent=1 // pred_region
      %79 = dma.done [#allocation9], 8192
    $region45: #{conv_encoder_forward.1} parent=1 // pred_fallthru
      _
    %v80 = vld [vmem:[#allocation2] sm:$0xff]
    %v81 = vld [vmem:[#allocation5] sm:$0xff]
    %v82 = vld [vmem:[#allocation5 + $0x8] sm:$0xff]
    %v83 = vld [vmem:[#allocation5 + $0x10] sm:$0xff]
    %v84 = vld [vmem:[#allocation5 + $0x18] sm:$0xff]
    %v85 = vld [vmem:[#allocation5 + $0x20] sm:$0xff]
    %v86 = vld [vmem:[#allocation5 + $0x28] sm:$0xff]
    %v87 = vld [vmem:[#allocation5 + $0x30] sm:$0xff]
    %v88 = vld [vmem:[#allocation5 + $0x38] sm:$0xff]
    %v89 = vld [vmem:[#allocation5 + $0x40] sm:$0xff]
    %v90 = vld [vmem:[#allocation5 + $0x48] sm:$0xff]
    %v91 = vld [vmem:[#allocation5 + $0x50] sm:$0xff]
    %v92 = vld [vmem:[#allocation5 + $0x58] sm:$0xff]
    %v93 = vld [vmem:[#allocation5 + $0x60] sm:$0xff]
    %v94 = vld [vmem:[#allocation5 + $0x68] sm:$0xff]
    %v95 = vld [vmem:[#allocation5 + $0x70] sm:$0xff]
    %v96 = vld [vmem:[#allocation5 + $0x78] sm:$0xff]
    %v97 = vld [vmem:[%s2] sm:$0x3]
    %v99 = vlaneseq
    %v100 = vshrl.u32 %v99, 7
    %v101 = vsub.s32 0, %v100
    %v102 = vrot.slane %v97, %v101
    %v103 = vlaneseq
    %v104 = vshrl.u32 %v103, 7
    %v105 = vsub.s32 1, %v104
    %v106 = vrot.slane %v97, %v105
    %vm109 = vcmask 523264
    %v111 = vsel %vm109, %v80, 0
    %113 = vmatprep.subr.mxu0 0.0
    %114 = vmatpush1.msra.mxu0 0.0
    %115 = vmatprep.subr.mxu0 0.0
    %116 = vmatpush1.msra.mxu0 0.0
    %117 = vmatprep.subr.mxu0 0.0
    %118 = vmatpush1.msra.mxu0 0.0
    %119 = vmatprep.subr.mxu0 0.0
    %120 = vmatpush1.msra.mxu0 0.0
    %121 = vmatprep.subr.mxu0 0.0
    %122 = vmatpush1.msra.mxu0 0.0
    %123 = vmatprep.subr.mxu0 0.0
    %124 = vmatpush1.msra.mxu0 0.0
    %125 = vmatprep.subr.mxu0 0.0
    %126 = vmatpush1.msra.mxu0 0.0
    %127 = vmatprep.subr.mxu0 0.0
    %128 = vmatpush1.msra.mxu0 0.0
    %129 = vmatprep.subr.mxu0 %v96
    %130 = vmatpush1.msra.mxu0 %v95
    %131 = vmatprep.subr.mxu0 %v94
    %132 = vmatpush1.msra.mxu0 %v93
    %133 = vmatprep.subr.mxu0 %v92
    %134 = vmatpush1.msra.mxu0 %v91
    %135 = vmatprep.subr.mxu0 %v90
    %136 = vmatpush1.msra.mxu0 %v89
    %137 = vmatprep.subr.mxu0 %v88
    %138 = vmatpush1.msra.mxu0 %v87
    %139 = vmatprep.subr.mxu0 %v86
    %140 = vmatpush1.msra.mxu0 %v85
    %141 = vmatprep.subr.mxu0 %v84
    %142 = vmatpush1.msra.mxu0 %v83
    %143 = vmatprep.subr.mxu0 %v82
    %144 = vmatpush1.msra.mxu0 %v81
    %145 = vmatprep.subr.mxu0 0.0
    %146 = vmatpush2.msra.mxu0 0.0
    %147 = vmatprep.subr.mxu0 0.0
    %148 = vmatpush2.msra.mxu0 0.0
    %149 = vmatprep.subr.mxu0 0.0
    %150 = vmatpush2.msra.mxu0 0.0
    %151 = vmatprep.subr.mxu0 0.0
    %152 = vmatpush2.msra.mxu0 0.0
    %153 = vmatprep.subr.mxu0 0.0
    %154 = vmatpush2.msra.mxu0 0.0
    %155 = vmatprep.subr.mxu0 0.0
    %156 = vmatpush2.msra.mxu0 0.0
    %157 = vmatprep.subr.mxu0 0.0
    %158 = vmatpush2.msra.mxu0 0.0
    %159 = vmatprep.subr.mxu0 0.0
    %160 = vmatpush2.msra.mxu0 0.0
    %161 = vmatprep.subr.mxu0 0.0
    %162 = vmatpush2.msra.mxu0 0.0
    %163 = vmatprep.subr.mxu0 0.0
    %164 = vmatpush2.msra.mxu0 0.0
    %165 = vmatprep.subr.mxu0 0.0
    %166 = vmatpush2.msra.mxu0 0.0
    %167 = vmatprep.subr.mxu0 0.0
    %168 = vmatpush2.msra.mxu0 0.0
    %169 = vmatprep.subr.mxu0 0.0
    %170 = vmatpush2.msra.mxu0 0.0
    %171 = vmatprep.subr.mxu0 0.0
    %172 = vmatpush2.msra.mxu0 0.0
    %173 = vmatprep.subr.mxu0 0.0
    %174 = vmatpush2.msra.mxu0 0.0
    %175 = vmatprep.subr.mxu0 0.0
    %176 = vmatpush2.msra.mxu0 0.0
    %177 = vmatprep.mubr.f32.mxu0 0.0
    %178 = vmatmul.mubr.f32.gmra.mxu0 %v111
    %v179 = vpop.f32.mrf.mxu0
    %v180 = vadd.f32 %v102, %v179
    %v181 = vpop.f32.mrf.mxu0
    %v182 = vadd.f32 %v106, %v181
    %183 = vdwg.mxu0
    %v184 = vmax.f32 %v180, 0.0
    %v185 = vmax.f32 %v182, 0.0
    %v186 = vld [vmem:[#allocation7] sm:$0xff]
    %v187 = vld [vmem:[#allocation7 + $0x8] sm:$0xff]
    %v188 = vld [vmem:[#allocation7 + $0x10] sm:$0xff]
    %v189 = vld [vmem:[#allocation7 + $0x18] sm:$0xff]
    %v190 = vld [vmem:[#allocation7 + $0x20] sm:$0xff]
    %v191 = vld [vmem:[#allocation7 + $0x28] sm:$0xff]
    %v192 = vld [vmem:[#allocation7 + $0x30] sm:$0xff]
    %v193 = vld [vmem:[#allocation7 + $0x38] sm:$0xff]
    %v194 = vld [vmem:[#allocation7 + $0x40] sm:$0xff]
    %v195 = vld [vmem:[#allocation7 + $0x48] sm:$0xff]
    %v196 = vld [vmem:[#allocation7 + $0x50] sm:$0xff]
    %v197 = vld [vmem:[#allocation7 + $0x58] sm:$0xff]
    %v198 = vld [vmem:[#allocation7 + $0x60] sm:$0xff]
    %v199 = vld [vmem:[#allocation7 + $0x68] sm:$0xff]
    %v200 = vld [vmem:[#allocation7 + $0x70] sm:$0xff]
    %v201 = vld [vmem:[#allocation7 + $0x78] sm:$0xff]
    %v202 = vld [vmem:[#allocation7 + $0x80] sm:$0xff]
    %v203 = vld [vmem:[#allocation7 + $0x88] sm:$0xff]
    %v204 = vld [vmem:[#allocation7 + $0x90] sm:$0xff]
    %v205 = vld [vmem:[#allocation7 + $0x98] sm:$0xff]
    %v206 = vld [vmem:[#allocation7 + $0xa0] sm:$0xff]
    %v207 = vld [vmem:[#allocation7 + $0xa8] sm:$0xff]
    %v208 = vld [vmem:[#allocation7 + $0xb0] sm:$0xff]
    %v209 = vld [vmem:[#allocation7 + $0xb8] sm:$0xff]
    %v210 = vld [vmem:[#allocation7 + $0xc0] sm:$0xff]
    %v211 = vld [vmem:[#allocation7 + $0xc8] sm:$0xff]
    %v212 = vld [vmem:[#allocation7 + $0xd0] sm:$0xff]
    %v213 = vld [vmem:[#allocation7 + $0xd8] sm:$0xff]
    %v214 = vld [vmem:[#allocation7 + $0xe0] sm:$0xff]
    %v215 = vld [vmem:[#allocation7 + $0xe8] sm:$0xff]
    %v216 = vld [vmem:[#allocation7 + $0xf0] sm:$0xff]
    %v217 = vld [vmem:[#allocation7 + $0xf8] sm:$0xff]
    %v218 = vld [vmem:[#allocation7 + $0x100] sm:$0xff]
    %v219 = vld [vmem:[#allocation7 + $0x108] sm:$0xff]
    %v220 = vld [vmem:[#allocation7 + $0x110] sm:$0xff]
    %v221 = vld [vmem:[#allocation7 + $0x118] sm:$0xff]
    %v222 = vld [vmem:[#allocation7 + $0x120] sm:$0xff]
    %v223 = vld [vmem:[#allocation7 + $0x128] sm:$0xff]
    %v224 = vld [vmem:[#allocation7 + $0x130] sm:$0xff]
    %v225 = vld [vmem:[#allocation7 + $0x138] sm:$0xff]
    %v226 = vld [vmem:[#allocation7 + $0x140] sm:$0xff]
    %v227 = vld [vmem:[#allocation7 + $0x148] sm:$0xff]
    %v228 = vld [vmem:[#allocation7 + $0x150] sm:$0xff]
    %v229 = vld [vmem:[#allocation7 + $0x158] sm:$0xff]
    %v230 = vld [vmem:[#allocation7 + $0x160] sm:$0xff]
    %v231 = vld [vmem:[#allocation7 + $0x168] sm:$0xff]
    %v232 = vld [vmem:[#allocation7 + $0x170] sm:$0xff]
    %v233 = vld [vmem:[#allocation7 + $0x178] sm:$0xff]
    %v234 = vld [vmem:[#allocation7 + $0x180] sm:$0xff]
    %v235 = vld [vmem:[#allocation7 + $0x188] sm:$0xff]
    %v236 = vld [vmem:[#allocation7 + $0x190] sm:$0xff]
    %v237 = vld [vmem:[#allocation7 + $0x198] sm:$0xff]
    %v238 = vld [vmem:[#allocation7 + $0x1a0] sm:$0xff]
    %v239 = vld [vmem:[#allocation7 + $0x1a8] sm:$0xff]
    %v240 = vld [vmem:[#allocation7 + $0x1b0] sm:$0xff]
    %v241 = vld [vmem:[#allocation7 + $0x1b8] sm:$0xff]
    %v242 = vld [vmem:[#allocation7 + $0x1c0] sm:$0xff]
    %v243 = vld [vmem:[#allocation7 + $0x1c8] sm:$0xff]
    %v244 = vld [vmem:[#allocation7 + $0x1d0] sm:$0xff]
    %v245 = vld [vmem:[#allocation7 + $0x1d8] sm:$0xff]
    %v246 = vld [vmem:[#allocation7 + $0x1e0] sm:$0xff]
    %v247 = vld [vmem:[#allocation7 + $0x1e8] sm:$0xff]
    %v248 = vld [vmem:[#allocation7 + $0x1f0] sm:$0xff]
    %v249 = vld [vmem:[#allocation7 + $0x1f8] sm:$0xff]
    %v250 = vld [vmem:[%s4] sm:$0x3]
    %v252 = vlaneseq
    %v253 = vshrl.u32 %v252, 7
    %v254 = vsub.s32 0, %v253
    %v255 = vrot.slane %v250, %v254
    %v256 = vlaneseq
    %v257 = vshrl.u32 %v256, 7
    %v258 = vsub.s32 1, %v257
    %v259 = vrot.slane %v250, %v258
    %262 = vmatprep.subr.mxu0 %v217
    %263 = vmatpush1.msra.mxu0 %v216
    %264 = vmatprep.subr.mxu0 %v215
    %265 = vmatpush1.msra.mxu0 %v214
    %266 = vmatprep.subr.mxu0 %v213
    %267 = vmatpush1.msra.mxu0 %v212
    %268 = vmatprep.subr.mxu0 %v211
    %269 = vmatpush1.msra.mxu0 %v210
    %270 = vmatprep.subr.mxu0 %v209
    %271 = vmatpush1.msra.mxu0 %v208
    %272 = vmatprep.subr.mxu0 %v207
    %273 = vmatpush1.msra.mxu0 %v206
    %274 = vmatprep.subr.mxu0 %v205
    %275 = vmatpush1.msra.mxu0 %v204
    %276 = vmatprep.subr.mxu0 %v203
    %277 = vmatpush1.msra.mxu0 %v202
    %278 = vmatprep.subr.mxu0 %v201
    %279 = vmatpush1.msra.mxu0 %v200
    %280 = vmatprep.subr.mxu0 %v199
    %281 = vmatpush1.msra.mxu0 %v198
    %282 = vmatprep.subr.mxu0 %v197
    %283 = vmatpush1.msra.mxu0 %v196
    %284 = vmatprep.subr.mxu0 %v195
    %285 = vmatpush1.msra.mxu0 %v194
    %286 = vmatprep.subr.mxu0 %v193
    %287 = vmatpush1.msra.mxu0 %v192
    %288 = vmatprep.subr.mxu0 %v191
    %289 = vmatpush1.msra.mxu0 %v190
    %290 = vmatprep.subr.mxu0 %v189
    %291 = vmatpush1.msra.mxu0 %v188
    %292 = vmatprep.subr.mxu0 %v187
    %293 = vmatpush1.msra.mxu0 %v186
    %294 = vmatprep.subr.mxu0 %v249
    %295 = vmatpush2.msra.mxu0 %v248
    %296 = vmatprep.subr.mxu0 %v247
    %297 = vmatpush2.msra.mxu0 %v246
    %298 = vmatprep.subr.mxu0 %v245
    %299 = vmatpush2.msra.mxu0 %v244
    %300 = vmatprep.subr.mxu0 %v243
    %301 = vmatpush2.msra.mxu0 %v242
    %302 = vmatprep.subr.mxu0 %v241
    %303 = vmatpush2.msra.mxu0 %v240
    %304 = vmatprep.subr.mxu0 %v239
    %305 = vmatpush2.msra.mxu0 %v238
    %306 = vmatprep.subr.mxu0 %v237
    %307 = vmatpush2.msra.mxu0 %v236
    %308 = vmatprep.subr.mxu0 %v235
    %309 = vmatpush2.msra.mxu0 %v234
    %310 = vmatprep.subr.mxu0 %v233
    %311 = vmatpush2.msra.mxu0 %v232
    %312 = vmatprep.subr.mxu0 %v231
    %313 = vmatpush2.msra.mxu0 %v230
    %314 = vmatprep.subr.mxu0 %v229
    %315 = vmatpush2.msra.mxu0 %v228
    %316 = vmatprep.subr.mxu0 %v227
    %317 = vmatpush2.msra.mxu0 %v226
    %318 = vmatprep.subr.mxu0 %v225
    %319 = vmatpush2.msra.mxu0 %v224
    %320 = vmatprep.subr.mxu0 %v223
    %321 = vmatpush2.msra.mxu0 %v222
    %322 = vmatprep.subr.mxu0 %v221
    %323 = vmatpush2.msra.mxu0 %v220
    %324 = vmatprep.subr.mxu0 %v219
    %325 = vmatpush2.msra.mxu0 %v218
    %326 = vmatprep.mubr.f32.mxu0 %v185
    %327 = vmatmul.mubr.f32.gmra.mxu0 %v184
    %v328 = vpop.f32.mrf.mxu0
    %v329 = vadd.f32 %v255, %v328
    %v330 = vpop.f32.mrf.mxu0
    %v331 = vadd.f32 %v259, %v330
    %332 = vdwg.mxu0
    %v333 = vmax.f32 %v329, 0.0
    %v334 = vmax.f32 %v331, 0.0
    %v335 = vld [vmem:[#allocation8] sm:$0xff]
    %v336 = vld [vmem:[#allocation8 + $0x8] sm:$0xff]
    %v337 = vld [vmem:[#allocation8 + $0x10] sm:$0xff]
    %v338 = vld [vmem:[#allocation8 + $0x18] sm:$0xff]
    %v339 = vld [vmem:[#allocation8 + $0x20] sm:$0xff]
    %v340 = vld [vmem:[#allocation8 + $0x28] sm:$0xff]
    %v341 = vld [vmem:[#allocation8 + $0x30] sm:$0xff]
    %v342 = vld [vmem:[#allocation8 + $0x38] sm:$0xff]
    %v343 = vld [vmem:[#allocation8 + $0x40] sm:$0xff]
    %v344 = vld [vmem:[#allocation8 + $0x48] sm:$0xff]
    %v345 = vld [vmem:[#allocation8 + $0x50] sm:$0xff]
    %v346 = vld [vmem:[#allocation8 + $0x58] sm:$0xff]
    %v347 = vld [vmem:[#allocation8 + $0x60] sm:$0xff]
    %v348 = vld [vmem:[#allocation8 + $0x68] sm:$0xff]
    %v349 = vld [vmem:[#allocation8 + $0x70] sm:$0xff]
    %v350 = vld [vmem:[#allocation8 + $0x78] sm:$0xff]
    %v351 = vld [vmem:[#allocation8 + $0x80] sm:$0xff]
    %v352 = vld [vmem:[#allocation8 + $0x88] sm:$0xff]
    %v353 = vld [vmem:[#allocation8 + $0x90] sm:$0xff]
    %v354 = vld [vmem:[#allocation8 + $0x98] sm:$0xff]
    %v355 = vld [vmem:[#allocation8 + $0xa0] sm:$0xff]
    %v356 = vld [vmem:[#allocation8 + $0xa8] sm:$0xff]
    %v357 = vld [vmem:[#allocation8 + $0xb0] sm:$0xff]
    %v358 = vld [vmem:[#allocation8 + $0xb8] sm:$0xff]
    %v359 = vld [vmem:[#allocation8 + $0xc0] sm:$0xff]
    %v360 = vld [vmem:[#allocation8 + $0xc8] sm:$0xff]
    %v361 = vld [vmem:[#allocation8 + $0xd0] sm:$0xff]
    %v362 = vld [vmem:[#allocation8 + $0xd8] sm:$0xff]
    %v363 = vld [vmem:[#allocation8 + $0xe0] sm:$0xff]
    %v364 = vld [vmem:[#allocation8 + $0xe8] sm:$0xff]
    %v365 = vld [vmem:[#allocation8 + $0xf0] sm:$0xff]
    %v366 = vld [vmem:[#allocation8 + $0xf8] sm:$0xff]
    %v367 = vld [vmem:[#allocation8 + $0x100] sm:$0xff]
    %v368 = vld [vmem:[#allocation8 + $0x108] sm:$0xff]
    %v369 = vld [vmem:[#allocation8 + $0x110] sm:$0xff]
    %v370 = vld [vmem:[#allocation8 + $0x118] sm:$0xff]
    %v371 = vld [vmem:[#allocation8 + $0x120] sm:$0xff]
    %v372 = vld [vmem:[#allocation8 + $0x128] sm:$0xff]
    %v373 = vld [vmem:[#allocation8 + $0x130] sm:$0xff]
    %v374 = vld [vmem:[#allocation8 + $0x138] sm:$0xff]
    %v375 = vld [vmem:[#allocation8 + $0x140] sm:$0xff]
    %v376 = vld [vmem:[#allocation8 + $0x148] sm:$0xff]
    %v377 = vld [vmem:[#allocation8 + $0x150] sm:$0xff]
    %v378 = vld [vmem:[#allocation8 + $0x158] sm:$0xff]
    %v379 = vld [vmem:[#allocation8 + $0x160] sm:$0xff]
    %v380 = vld [vmem:[#allocation8 + $0x168] sm:$0xff]
    %v381 = vld [vmem:[#allocation8 + $0x170] sm:$0xff]
    %v382 = vld [vmem:[#allocation8 + $0x178] sm:$0xff]
    %v383 = vld [vmem:[#allocation8 + $0x180] sm:$0xff]
    %v384 = vld [vmem:[#allocation8 + $0x188] sm:$0xff]
    %v385 = vld [vmem:[#allocation8 + $0x190] sm:$0xff]
    %v386 = vld [vmem:[#allocation8 + $0x198] sm:$0xff]
    %v387 = vld [vmem:[#allocation8 + $0x1a0] sm:$0xff]
    %v388 = vld [vmem:[#allocation8 + $0x1a8] sm:$0xff]
    %v389 = vld [vmem:[#allocation8 + $0x1b0] sm:$0xff]
    %v390 = vld [vmem:[#allocation8 + $0x1b8] sm:$0xff]
    %v391 = vld [vmem:[#allocation8 + $0x1c0] sm:$0xff]
    %v392 = vld [vmem:[#allocation8 + $0x1c8] sm:$0xff]
    %v393 = vld [vmem:[#allocation8 + $0x1d0] sm:$0xff]
    %v394 = vld [vmem:[#allocation8 + $0x1d8] sm:$0xff]
    %v395 = vld [vmem:[#allocation8 + $0x1e0] sm:$0xff]
    %v396 = vld [vmem:[#allocation8 + $0x1e8] sm:$0xff]
    %v397 = vld [vmem:[#allocation8 + $0x1f0] sm:$0xff]
    %v398 = vld [vmem:[#allocation8 + $0x1f8] sm:$0xff]
    %v399 = vld [vmem:[%s6] sm:$0x3]
    %v401 = vlaneseq
    %v402 = vshrl.u32 %v401, 7
    %v403 = vsub.s32 0, %v402
    %v404 = vrot.slane %v399, %v403
    %v405 = vlaneseq
    %v406 = vshrl.u32 %v405, 7
    %v407 = vsub.s32 1, %v406
    %v408 = vrot.slane %v399, %v407
    %411 = vmatprep.subr.mxu0 %v366
    %412 = vmatpush1.msra.mxu0 %v365
    %413 = vmatprep.subr.mxu0 %v364
    %414 = vmatpush1.msra.mxu0 %v363
    %415 = vmatprep.subr.mxu0 %v362
    %416 = vmatpush1.msra.mxu0 %v361
    %417 = vmatprep.subr.mxu0 %v360
    %418 = vmatpush1.msra.mxu0 %v359
    %419 = vmatprep.subr.mxu0 %v358
    %420 = vmatpush1.msra.mxu0 %v357
    %421 = vmatprep.subr.mxu0 %v356
    %422 = vmatpush1.msra.mxu0 %v355
    %423 = vmatprep.subr.mxu0 %v354
    %424 = vmatpush1.msra.mxu0 %v353
    %425 = vmatprep.subr.mxu0 %v352
    %426 = vmatpush1.msra.mxu0 %v351
    %427 = vmatprep.subr.mxu0 %v350
    %428 = vmatpush1.msra.mxu0 %v349
    %429 = vmatprep.subr.mxu0 %v348
    %430 = vmatpush1.msra.mxu0 %v347
    %431 = vmatprep.subr.mxu0 %v346
    %432 = vmatpush1.msra.mxu0 %v345
    %433 = vmatprep.subr.mxu0 %v344
    %434 = vmatpush1.msra.mxu0 %v343
    %435 = vmatprep.subr.mxu0 %v342
    %436 = vmatpush1.msra.mxu0 %v341
    %437 = vmatprep.subr.mxu0 %v340
    %438 = vmatpush1.msra.mxu0 %v339
    %439 = vmatprep.subr.mxu0 %v338
    %440 = vmatpush1.msra.mxu0 %v337
    %441 = vmatprep.subr.mxu0 %v336
    %442 = vmatpush1.msra.mxu0 %v335
    %443 = vmatprep.subr.mxu0 %v398
    %444 = vmatpush2.msra.mxu0 %v397
    %445 = vmatprep.subr.mxu0 %v396
    %446 = vmatpush2.msra.mxu0 %v395
    %447 = vmatprep.subr.mxu0 %v394
    %448 = vmatpush2.msra.mxu0 %v393
    %449 = vmatprep.subr.mxu0 %v392
    %450 = vmatpush2.msra.mxu0 %v391
    %451 = vmatprep.subr.mxu0 %v390
    %452 = vmatpush2.msra.mxu0 %v389
    %453 = vmatprep.subr.mxu0 %v388
    %454 = vmatpush2.msra.mxu0 %v387
    %455 = vmatprep.subr.mxu0 %v386
    %456 = vmatpush2.msra.mxu0 %v385
    %457 = vmatprep.subr.mxu0 %v384
    %458 = vmatpush2.msra.mxu0 %v383
    %459 = vmatprep.subr.mxu0 %v382
    %460 = vmatpush2.msra.mxu0 %v381
    %461 = vmatprep.subr.mxu0 %v380
    %462 = vmatpush2.msra.mxu0 %v379
    %463 = vmatprep.subr.mxu0 %v378
    %464 = vmatpush2.msra.mxu0 %v377
    %465 = vmatprep.subr.mxu0 %v376
    %466 = vmatpush2.msra.mxu0 %v375
    %467 = vmatprep.subr.mxu0 %v374
    %468 = vmatpush2.msra.mxu0 %v373
    %469 = vmatprep.subr.mxu0 %v372
    %470 = vmatpush2.msra.mxu0 %v371
    %471 = vmatprep.subr.mxu0 %v370
    %472 = vmatpush2.msra.mxu0 %v369
    %473 = vmatprep.subr.mxu0 %v368
    %474 = vmatpush2.msra.mxu0 %v367
    %475 = vmatprep.mubr.f32.mxu0 %v334
    %476 = vmatmul.mubr.f32.gmra.mxu0 %v333
    %v477 = vpop.f32.mrf.mxu0
    %v478 = vadd.f32 %v404, %v477
    %v479 = vpop.f32.mrf.mxu0
    %v480 = vadd.f32 %v408, %v479
    %481 = vdwg.mxu0
    %v482 = vmax.f32 %v478, 0.0
    %v483 = vmax.f32 %v480, 0.0
    %484 = vst [vmem:[#allocation10] sm:$0xff] %v482
    %485 = vst [vmem:[#allocation10 + $0x8] sm:$0xff] %v483
    // Predicated region
    $region46: #{conv_encoder_forward.1} parent=1 // pred_check
      _
    $region47: #{conv_encoder_forward.1} parent=1 // pred_check_branch
      %487 = sbr.rel (0) target = $region49
    $region48: #{conv_encoder_forward.1} parent=1 // pred_region
      %s489 = ssub.s32 256, 256
      %490 = vsyncadd [#allocation4], %s489
      %s492 = sshll.u32 [#allocation10], 4
      %s493 = int_to_ptr.vmem [resolvable:$true] %s492
      %495 = dma.vmem_to_hbm [thread:$0]  %s493, 256, %s7, [#allocation4]
    $region49: #{conv_encoder_forward.1} parent=1 // pred_fallthru
      _
    // Predicated region
    $region50: #{conv_encoder_forward.1} parent=1 // pred_check
      _
    $region51: #{conv_encoder_forward.1} parent=1 // pred_check_branch
      %497 = sbr.rel (0) target = $region53
    $region52: #{conv_encoder_forward.1} parent=1 // pred_region
      %498 = dma.done [#allocation4], 256
    $region53: #{conv_encoder_forward.1} parent=1 // pred_fallthru
      _
    %499 = vsyncpa [#allocation3], 1
    %500 = vsyncpa [#allocation6], 1
    %501 = vsyncpa [#allocation9], 1
    %502 = vsyncpa [#allocation4], 1

</llo_original>
